<compile_context>
chip_gen: v5e
topology: v5e:2x2
jax: 0.10.0
libtpu: 0.0.40
codegen_flags: <defaults>
</compile_context>

<pallas_src>
import math
import functools

import jax
import jax.numpy as jnp
import numpy as np
from jax.experimental import pallas as pl
from jax.experimental.pallas import tpu as pltpu


def _round_up(x, m):
    return (x + m - 1) // m * m


_MAX_TILE_N = 32768  # lanes; <=1 MiB/input buffer at small C, amortizes step overhead


def _pick_tiling(n):
    """Pick (tile_n, n_pad) for the anchor/lane axis.

    * lane-dense multiple-of-128 tiles,
    * >=2 (even) grid steps whenever possible so v7x's two TensorCores both
      get work under dimension_semantics=("parallel",),
    * tiles capped at _MAX_TILE_N: big enough to amortize ~0.35us/step
      pipeline overhead on single-TC v5e/v6e, tiny vs. any VMEM limit.
    """
    n128 = _round_up(n, 128)
    if n128 <= 128:
        return n128, n128
    num_tiles = max(2, -(-n128 // _MAX_TILE_N))
    num_tiles += num_tiles % 2                     # even split for 2-TC v7x
    tile_n = _round_up(-(-n128 // num_tiles), 128)
    n_pad = _round_up(n, tile_n)
    return tile_n, n_pad


def _decode_kernel(x_ref, out_ref, *, tile_n, fm_w, inv_fm_w, grid_w, grid_h,
                   anchor_w, anchor_h, num_classes):
    """One tile of `tile_n` anchors.

    x_ref:   (4+C, tile_n) rows = (tx, ty, tw, th, logit_0 .. logit_{C-1})
    out_ref: (6, tile_n)   rows = (x1, y1, x2, y2, score, label-as-f32)
    """
    # ---- anchor-grid generation (equivalent of _get_anchor_boxes) ----------
    # row = n // fm_w, col = n % fm_w recovered with f32 floor math:
    # (n + 0.5) * (1/fm_w) is at least 0.5/fm_w away from any integer, which
    # dominates the rounding error for N < 2^21 (guarded in decode()).
    lane = jax.lax.broadcasted_iota(jnp.int32, (1, tile_n), 1)
    nf = (pl.program_id(0) * tile_n + lane).astype(jnp.float32)
    row = jnp.floor((nf + 0.5) * inv_fm_w)
    col = nf - row * fm_w
    cx = (col + 0.5) * grid_w
    cy = (row + 0.5) * grid_h

    # ---- box decoding -------------------------------------------------------
    tx = x_ref[0:1, :]
    ty = x_ref[1:2, :]
    tw = x_ref[2:3, :]
    th = x_ref[3:4, :]
    x = tx * anchor_w + cx
    y = ty * anchor_h + cy
    w = jnp.exp(tw) * anchor_w
    h = jnp.exp(th) * anchor_h

    # ---- per-anchor class score: sigmoid().max(classes) ---------------------
    # sigmoid is monotone -> running max/argmax over raw logits (C-1 unrolled
    # VPU compare/selects on (1, tile_n) rows), one sigmoid on the winner.
    best = x_ref[4:5, :]
    lbl = jnp.zeros((1, tile_n), jnp.float32)
    for c in range(1, num_classes):
        logit_c = x_ref[4 + c:5 + c, :]
        gt = logit_c > best                       # strict '>' == first-argmax
        best = jnp.where(gt, logit_c, best)
        lbl = jnp.where(gt, float(c), lbl)
    score = jax.nn.sigmoid(best)

    # ---- packed store (6 sublanes, lane-dense) ------------------------------
    out_ref[0:1, :] = x - 0.5 * w
    out_ref[1:2, :] = y - 0.5 * h
    out_ref[2:3, :] = x + 0.5 * w
    out_ref[3:4, :] = y + 0.5 * h
    out_ref[4:5, :] = score
    out_ref[5:6, :] = lbl


@functools.partial(
    jax.jit,
    static_argnames=("fm_w", "grid_w", "grid_h", "anchor_w", "anchor_h",
                     "num_classes", "n_valid", "tile_n", "n_pad"))
def _decode_jit(loc_preds, cls_preds, *, fm_w, grid_w, grid_h, anchor_w,
                anchor_h, num_classes, n_valid, tile_n, n_pad):
    """Fused layout glue + Pallas kernel + output unpack (single dispatch)."""
    N, C = n_valid, num_classes
    loc_t = loc_preds.astype(jnp.float32).reshape(N, 4).T       # (4, N)
    cls_t = cls_preds.astype(jnp.float32).reshape(N, C).T       # (C, N)
    x = jnp.concatenate([loc_t, cls_t], axis=0)                 # (4+C, N)
    if n_pad != N:
        # zero pad -> exp(0)=1 in the dead tail, no inf/NaN in sliced-off lanes
        x = jnp.pad(x, ((0, 0), (0, n_pad - N)))

    kernel = functools.partial(
        _decode_kernel, tile_n=tile_n, fm_w=float(fm_w),
        inv_fm_w=1.0 / float(fm_w), grid_w=grid_w, grid_h=grid_h,
        anchor_w=anchor_w, anchor_h=anchor_h, num_classes=C)

    packed = pl.pallas_call(
        kernel,
        out_shape=jax.ShapeDtypeStruct((6, n_pad), jnp.float32),
        grid=(n_pad // tile_n,),
        in_specs=[pl.BlockSpec((4 + C, tile_n), lambda i: (0, i))],
        out_specs=pl.BlockSpec((6, tile_n), lambda i: (0, i)),
        compiler_params=pltpu.CompilerParams(
            dimension_semantics=("parallel",)),
    )(x)

    packed = packed[:, :N]
    boxes = packed[0:4].T                    # [N, 4]
    score = packed[4]                        # [N]
    labels = packed[5].astype(jnp.int32)     # [N] (small exact ints in f32)
    return boxes, labels, score


class DataEncoder:
    def __init__(self, fpn_skip_layers=0, anchor_areas=(32 * 32.0,),
                 aspect_ratios=(1 / 1.0,), scale_ratios=(1.0,),
                 iuo_fit_thr=0.5, iuo_nofit_thr=0.4):
        self.anchor_areas = list(anchor_areas)
        self.aspect_ratios = list(aspect_ratios)
        self.scale_ratios = list(scale_ratios)
        self.iuo_fit_thr = iuo_fit_thr
        self.iuo_nofit_thr = iuo_nofit_thr
        self.fpn_skip_layers = fpn_skip_layers
        self.anchor_wh = self._get_anchor_wh()     # [num_fms, anchors_per_cell, 2]

    def num_layers(self):
        return len(self.anchor_areas)

    def num_anchors(self):
        return len(self.aspect_ratios) * len(self.scale_ratios)

    def _get_anchor_wh(self):
        anchor_wh = []
        for s in self.anchor_areas:
            for ar in self.aspect_ratios:
                h = math.sqrt(s / ar)
                w = ar * h
                for sr in self.scale_ratios:
                    anchor_wh.append([w * sr, h * sr])
        num_fms = len(self.anchor_areas)
        return np.asarray(anchor_wh, dtype=np.float32).reshape(num_fms, -1, 2)

    def decode(self, loc_preds, cls_preds, input_size,
               cls_thresh=0.5, nms_thresh=0.5):
        assert len(self.anchor_areas) == 1 and self.num_anchors() == 1
        w_in, h_in = float(input_size[0]), float(input_size[1])
        stride = math.pow(2.0, 3 + self.fpn_skip_layers)
        fm_w = int(math.ceil(w_in / stride))
        fm_h = int(math.ceil(h_in / stride))
        grid_w = w_in / fm_w
        grid_h = h_in / fm_h
        anchor_w = float(self.anchor_wh[0, 0, 0])
        anchor_h = float(self.anchor_wh[0, 0, 1])

        N = fm_w * fm_h
        C = int(cls_preds.shape[-1])
        assert loc_preds.shape[0] == N and cls_preds.shape[0] == N
        # guard for the exact-floor f32 row/col recovery in the kernel
        assert N < (1 << 21), "anchor count too large for f32 index math"

        tile_n, n_pad = _pick_tiling(N)

        # TODO(synk): box_nms_fast / box_nms and the cls_thresh filtering
        # (sequential, data-dependent suppression + boolean keep-gather) have
        # no clean Pallas equivalent; all decoded boxes/labels/scores are
        # returned un-suppressed.
        return _decode_jit(
            jnp.asarray(loc_preds), jnp.asarray(cls_preds),
            fm_w=fm_w, grid_w=grid_w, grid_h=grid_h,
            anchor_w=anchor_w, anchor_h=anchor_h,
            num_classes=C, n_valid=N, tile_n=tile_n, n_pad=n_pad)


def _reference_decode(loc_preds, cls_preds, input_size, enc):
    """Pure-numpy replica of the PyTorch decode math (no NMS)."""
    w_in, h_in = float(input_size[0]), float(input_size[1])
    stride = math.pow(2.0, 3 + enc.fpn_skip_layers)
    fm_w = int(math.ceil(w_in / stride))
    fm_h = int(math.ceil(h_in / stride))
    grid = np.array([w_in / fm_w, h_in / fm_h], np.float32)
    jj, ii = np.meshgrid(np.arange(fm_w), np.arange(fm_h))      # [fm_h, fm_w]
    xy = (np.stack([jj, ii], -1).astype(np.float32) + 0.5) * grid
    wh = np.broadcast_to(enc.anchor_wh[0].reshape(1, 1, 2), (fm_h, fm_w, 2))
    anchors = np.concatenate([xy, wh], -1).reshape(-1, 4)       # [N, 4]
    loc = np.asarray(loc_preds, np.float32)
    cls = np.asarray(cls_preds, np.float32)
    xy_d = loc[:, :2] * anchors[:, 2:] + anchors[:, :2]
    wh_d = np.exp(loc[:, 2:]) * anchors[:, 2:]
    boxes = np.concatenate([xy_d - wh_d / 2, xy_d + wh_d / 2], 1)
    sig = 1.0 / (1.0 + np.exp(-cls))
    score = sig.max(1)
    labels = sig.argmax(1)
    return boxes, labels, score


def _run_case(enc, key, input_size, num_classes):
    stride = math.pow(2.0, 3 + enc.fpn_skip_layers)
    fm_w = int(math.ceil(input_size[0] / stride))
    fm_h = int(math.ceil(input_size[1] / stride))
    N = fm_w * fm_h
    k1, k2 = jax.random.split(key)
    loc_preds = jax.random.normal(k1, (N, 4), jnp.float32) * 0.1
    cls_preds = jax.random.normal(k2, (N, num_classes), jnp.float32)

    boxes, labels, score = enc.decode(loc_preds, cls_preds, input_size)
    jax.block_until_ready((boxes, labels, score))

    rb, rl, rs = _reference_decode(loc_preds, cls_preds, input_size, enc)
    np.testing.assert_allclose(np.asarray(boxes), rb, rtol=1e-5, atol=1e-4)
    np.testing.assert_allclose(np.asarray(score), rs, rtol=1e-5, atol=1e-5)
    np.testing.assert_array_equal(np.asarray(labels), rl)


if __name__ == "__main__":
    enc = DataEncoder()
    key = jax.random.PRNGKey(0)
    ka, kb = jax.random.split(key)

    # Case 1: 128x128 input -> 16x16 feature map, N=256 anchors (grid=2), 3 classes.
    _run_case(enc, ka, (128, 128), num_classes=3)
    # Case 2: non-aligned feature map (12x10 -> N=120, padded to 128), 5 classes.
    _run_case(enc, kb, (96, 80), num_classes=5)

    print("KERNEL_OK")
</pallas_src>

<mosaic_0001>
module attributes {stable_mosaic.version = 11 : i64} {
  func.func @_decode_kernel(%arg0: i32, %arg1: memref<7x128xf32, #tpu.memory_space<vmem>>, %arg2: memref<6x128xf32, #tpu.memory_space<vmem>>) attributes {dimension_semantics = [#tpu.dimension_semantics<parallel>], iteration_bounds = array<i64: 2>, scalar_prefetch = 0 : i64, scratch_operands = 0 : i64, tpu.core_type = #tpu.core_type<tc>, window_params = [{transform_indices = @transform_0, window_bounds = array<i64: 7, 128>}, {transform_indices = @transform_1, window_bounds = array<i64: 6, 128>}]} {
    %0 = tpu.iota {dimensions = array<i32: 1>} : vector<1x128xi32>
    %c128_i32 = arith.constant 128 : i32
    %1 = arith.muli %arg0, %c128_i32 : i32
    %2 = vector.broadcast %1 : i32 to vector<1x128xi32>
    %3 = arith.addi %2, %0 : vector<1x128xi32>
    %4 = arith.sitofp %3 : vector<1x128xi32> to vector<1x128xf32>
    %cst = arith.constant 5.000000e-01 : f32
    %5 = vector.broadcast %cst : f32 to vector<1x128xf32>
    %6 = arith.addf %4, %5 : vector<1x128xf32>
    %cst_0 = arith.constant 6.250000e-02 : f32
    %7 = vector.broadcast %cst_0 : f32 to vector<1x128xf32>
    %8 = arith.mulf %6, %7 : vector<1x128xf32>
    %9 = math.floor %8 : vector<1x128xf32>
    %cst_1 = arith.constant 1.600000e+01 : f32
    %10 = vector.broadcast %cst_1 : f32 to vector<1x128xf32>
    %11 = arith.mulf %9, %10 : vector<1x128xf32>
    %12 = arith.subf %4, %11 : vector<1x128xf32>
    %cst_2 = arith.constant 5.000000e-01 : f32
    %13 = vector.broadcast %cst_2 : f32 to vector<1x128xf32>
    %14 = arith.addf %12, %13 : vector<1x128xf32>
    %cst_3 = arith.constant 8.000000e+00 : f32
    %15 = vector.broadcast %cst_3 : f32 to vector<1x128xf32>
    %16 = arith.mulf %14, %15 : vector<1x128xf32>
    %cst_4 = arith.constant 5.000000e-01 : f32
    %17 = vector.broadcast %cst_4 : f32 to vector<1x128xf32>
    %18 = arith.addf %9, %17 : vector<1x128xf32>
    %cst_5 = arith.constant 8.000000e+00 : f32
    %19 = vector.broadcast %cst_5 : f32 to vector<1x128xf32>
    %20 = arith.mulf %18, %19 : vector<1x128xf32>
    %c0 = arith.constant 0 : index
    %c0_6 = arith.constant 0 : index
    %21 = vector.load %arg1[%c0, %c0_6] : memref<7x128xf32, #tpu.memory_space<vmem>>, vector<1x128xf32>
    %c1 = arith.constant 1 : index
    %c0_7 = arith.constant 0 : index
    %22 = vector.load %arg1[%c1, %c0_7] : memref<7x128xf32, #tpu.memory_space<vmem>>, vector<1x128xf32>
    %c2 = arith.constant 2 : index
    %c0_8 = arith.constant 0 : index
    %23 = vector.load %arg1[%c2, %c0_8] : memref<7x128xf32, #tpu.memory_space<vmem>>, vector<1x128xf32>
    %c3 = arith.constant 3 : index
    %c0_9 = arith.constant 0 : index
    %24 = vector.load %arg1[%c3, %c0_9] : memref<7x128xf32, #tpu.memory_space<vmem>>, vector<1x128xf32>
    %cst_10 = arith.constant 3.200000e+01 : f32
    %25 = vector.broadcast %cst_10 : f32 to vector<1x128xf32>
    %26 = arith.mulf %21, %25 : vector<1x128xf32>
    %27 = arith.addf %26, %16 : vector<1x128xf32>
    %cst_11 = arith.constant 3.200000e+01 : f32
    %28 = vector.broadcast %cst_11 : f32 to vector<1x128xf32>
    %29 = arith.mulf %22, %28 : vector<1x128xf32>
    %30 = arith.addf %29, %20 : vector<1x128xf32>
    %31 = math.exp %23 : vector<1x128xf32>
    %cst_12 = arith.constant 3.200000e+01 : f32
    %32 = vector.broadcast %cst_12 : f32 to vector<1x128xf32>
    %33 = arith.mulf %31, %32 : vector<1x128xf32>
    %34 = math.exp %24 : vector<1x128xf32>
    %cst_13 = arith.constant 3.200000e+01 : f32
    %35 = vector.broadcast %cst_13 : f32 to vector<1x128xf32>
    %36 = arith.mulf %34, %35 : vector<1x128xf32>
    %c4 = arith.constant 4 : index
    %c0_14 = arith.constant 0 : index
    %37 = vector.load %arg1[%c4, %c0_14] : memref<7x128xf32, #tpu.memory_space<vmem>>, vector<1x128xf32>
    %cst_15 = arith.constant 0.000000e+00 : f32
    %38 = vector.broadcast %cst_15 : f32 to vector<1x128xf32>
    %c5 = arith.constant 5 : index
    %c0_16 = arith.constant 0 : index
    %39 = vector.load %arg1[%c5, %c0_16] : memref<7x128xf32, #tpu.memory_space<vmem>>, vector<1x128xf32>
    %40 = arith.cmpf ogt, %39, %37 : vector<1x128xf32>
    %41 = arith.select %40, %39, %37 : vector<1x128xi1>, vector<1x128xf32>
    %cst_17 = arith.constant 1.000000e+00 : f32
    %42 = vector.broadcast %cst_17 : f32 to vector<1x128xf32>
    %43 = arith.select %40, %42, %38 : vector<1x128xi1>, vector<1x128xf32>
    %c6 = arith.constant 6 : index
    %c0_18 = arith.constant 0 : index
    %44 = vector.load %arg1[%c6, %c0_18] : memref<7x128xf32, #tpu.memory_space<vmem>>, vector<1x128xf32>
    %45 = arith.cmpf ogt, %44, %41 : vector<1x128xf32>
    %46 = arith.select %45, %44, %41 : vector<1x128xi1>, vector<1x128xf32>
    %cst_19 = arith.constant 2.000000e+00 : f32
    %47 = vector.broadcast %cst_19 : f32 to vector<1x128xf32>
    %48 = arith.select %45, %47, %43 : vector<1x128xi1>, vector<1x128xf32>
    %49 = arith.negf %46 : vector<1x128xf32>
    %50 = math.exp %49 : vector<1x128xf32>
    %cst_20 = arith.constant 1.000000e+00 : f32
    %51 = vector.broadcast %cst_20 : f32 to vector<1x128xf32>
    %52 = arith.addf %51, %50 : vector<1x128xf32>
    %53 = arith.divf %51, %52 : vector<1x128xf32>
    %cst_21 = arith.constant 5.000000e-01 : f32
    %54 = vector.broadcast %cst_21 : f32 to vector<1x128xf32>
    %55 = arith.mulf %54, %33 : vector<1x128xf32>
    %56 = arith.subf %27, %55 : vector<1x128xf32>
    %c0_22 = arith.constant 0 : index
    %c0_23 = arith.constant 0 : index
    %57 = vector.load %arg2[%c0_22, %c0_23] : memref<6x128xf32, #tpu.memory_space<vmem>>, vector<1x128xf32>
    tpu.vector_store %arg2[%c0_22, %c0_23], %56 {strides = array<i32>} : memref<6x128xf32, #tpu.memory_space<vmem>>, vector<1x128xf32>,
    %cst_24 = arith.constant 5.000000e-01 : f32
    %58 = vector.broadcast %cst_24 : f32 to vector<1x128xf32>
    %59 = arith.mulf %58, %36 : vector<1x128xf32>
    %60 = arith.subf %30, %59 : vector<1x128xf32>
    %c1_25 = arith.constant 1 : index
    %c0_26 = arith.constant 0 : index
    %61 = vector.load %arg2[%c1_25, %c0_26] : memref<6x128xf32, #tpu.memory_space<vmem>>, vector<1x128xf32>
    tpu.vector_store %arg2[%c1_25, %c0_26], %60 {strides = array<i32>} : memref<6x128xf32, #tpu.memory_space<vmem>>, vector<1x128xf32>,
    %cst_27 = arith.constant 5.000000e-01 : f32
    %62 = vector.broadcast %cst_27 : f32 to vector<1x128xf32>
    %63 = arith.mulf %62, %33 : vector<1x128xf32>
    %64 = arith.addf %27, %63 : vector<1x128xf32>
    %c2_28 = arith.constant 2 : index
    %c0_29 = arith.constant 0 : index
    %65 = vector.load %arg2[%c2_28, %c0_29] : memref<6x128xf32, #tpu.memory_space<vmem>>, vector<1x128xf32>
    tpu.vector_store %arg2[%c2_28, %c0_29], %64 {strides = array<i32>} : memref<6x128xf32, #tpu.memory_space<vmem>>, vector<1x128xf32>,
    %cst_30 = arith.constant 5.000000e-01 : f32
    %66 = vector.broadcast %cst_30 : f32 to vector<1x128xf32>
    %67 = arith.mulf %66, %36 : vector<1x128xf32>
    %68 = arith.addf %30, %67 : vector<1x128xf32>
    %c3_31 = arith.constant 3 : index
    %c0_32 = arith.constant 0 : index
    %69 = vector.load %arg2[%c3_31, %c0_32] : memref<6x128xf32, #tpu.memory_space<vmem>>, vector<1x128xf32>
    tpu.vector_store %arg2[%c3_31, %c0_32], %68 {strides = array<i32>} : memref<6x128xf32, #tpu.memory_space<vmem>>, vector<1x128xf32>,
    %c4_33 = arith.constant 4 : index
    %c0_34 = arith.constant 0 : index
    %70 = vector.load %arg2[%c4_33, %c0_34] : memref<6x128xf32, #tpu.memory_space<vmem>>, vector<1x128xf32>
    tpu.vector_store %arg2[%c4_33, %c0_34], %53 {strides = array<i32>} : memref<6x128xf32, #tpu.memory_space<vmem>>, vector<1x128xf32>,
    %c5_35 = arith.constant 5 : index
    %c0_36 = arith.constant 0 : index
    %71 = vector.load %arg2[%c5_35, %c0_36] : memref<6x128xf32, #tpu.memory_space<vmem>>, vector<1x128xf32>
    tpu.vector_store %arg2[%c5_35, %c0_36], %48 {strides = array<i32>} : memref<6x128xf32, #tpu.memory_space<vmem>>, vector<1x128xf32>,
    return
  }
  func.func @transform_0(%arg0: i32) -> (i32, i32) {
    %c0_i32 = arith.constant 0 : i32
    %c0_i32_0 = arith.constant 0 : i32
    return %c0_i32, %arg0 : i32, i32
  }
  func.func @transform_1(%arg0: i32) -> (i32, i32) {
    %c0_i32 = arith.constant 0 : i32
    %c0_i32_0 = arith.constant 0 : i32
    return %c0_i32, %arg0 : i32, i32
  }
}

</mosaic_0001>

<llo_original>
// kernel: _decode_jit.1
$region0: #{_decode_jit.1}
  #allocation0 [shape = 'u32[]', space=smem, size = 0x4, offset = 0x4, fixed_abs, tag = 'smem constant byte address 0x4 - core index']
  #allocation1 [shape = 'u32[72,128]{1,0:T(1,128)}', space=vmem, size = 0x9000, scoped, tag = 'internal scratch']
  %s0 = inlined_call_operand.vmem [shape: f32[7,256], index: 0, kind: input, shape index: {}]
  %s1 = inlined_call_operand.vmem [shape: f32[6,256], index: 1, kind: output, shape index: {}]
  %s2 = sld [smem:[#allocation0]]
  $region37: #{_decode_jit.1} parent=0
    _
  %s4 = ssub.s32 1, %s2
  %s5 = scalar_select 0, %s4, %s2
  loop: start=0, step=1, limit=4
  $region2: #{_decode_jit.1} parent=0 // loop_pre_header
    _
  $region3: #{_decode_jit.1} parent=0 // loop_header
    %s7 = sphi 0, %s11
    %p8 = scmp.ge.s32.totalorder %s7, 4
    %s17 = sphi 0, %s19
    %s20 = sphi 0, %s17
    %s21 = sphi 0, %s20
    %s37 = sphi 0, %s21
    %s43 = sphi 0, %s45
    %s46 = sphi 0, %s43
    %s47 = sphi 0, %s46
    %s63 = sphi 0, %s47
  $region4: #{_decode_jit.1} parent=0 // loop_header_branch
    %10 = sbr.rel (%p8) target = $region8
  $region5: #{_decode_jit.1} parent=0 // loop_body
    %s12 = ssub.s32 %s7, 1
    %s13 = ssub.s32 %s7, 2
    %s14 = sadd.s32 %s7, 1
    %s15 = ssub.s32 %s7, %s14
    %p16 = scmp.eq.s32.totalorder %s15, 0
    %s18 = sadd.s32 %s17, 1
    %s19 = scalar_select %p16, %s17, %s18
    %p22 = pneg %p16
    %p23 = scmp.eq.s32.totalorder %s7, 1
    %p24 = por %p22, %p23
    %p25 = scmp.ne.s32.totalorder %s17, %s20
    %p26 = scmp.eq.s32.totalorder %s7, 0
    %p27 = por %p25, %p26
    %p28 = scmp.ne.s32.totalorder %s17, %s20
    %p29 = scmp.eq.s32.totalorder %s12, 1
    %p30 = por %p28, %p29
    %p31 = scmp.ne.s32.totalorder %s20, %s21
    %p32 = scmp.eq.s32.totalorder %s12, 0
    %p33 = por %p31, %p32
    %p34 = scmp.ne.s32.totalorder %s20, %s21
    %p35 = scmp.eq.s32.totalorder %s13, 1
    %p36 = por %p34, %p35
    %p38 = scmp.ne.s32.totalorder %s21, %s37
    %p39 = scmp.eq.s32.totalorder %s13, 0
    %p40 = por %p38, %p39
    %s41 = ssub.s32 %s7, %s14
    %p42 = scmp.eq.s32.totalorder %s41, 0
    %s44 = sadd.s32 %s43, 1
    %s45 = scalar_select %p42, %s43, %s44
    %p48 = pneg %p42
    %p49 = scmp.eq.s32.totalorder %s7, 1
    %p50 = por %p48, %p49
    %p51 = scmp.ne.s32.totalorder %s43, %s46
    %p52 = scmp.eq.s32.totalorder %s7, 0
    %p53 = por %p51, %p52
    %p54 = scmp.ne.s32.totalorder %s43, %s46
    %p55 = scmp.eq.s32.totalorder %s12, 1
    %p56 = por %p54, %p55
    %p57 = scmp.ne.s32.totalorder %s46, %s47
    %p58 = scmp.eq.s32.totalorder %s12, 0
    %p59 = por %p57, %p58
    %p60 = scmp.ne.s32.totalorder %s46, %s47
    %p61 = scmp.eq.s32.totalorder %s13, 1
    %p62 = por %p60, %p61
    %p64 = scmp.ne.s32.totalorder %s47, %s63
    %p65 = scmp.eq.s32.totalorder %s13, 0
    %p66 = por %p64, %p65
    %p67 = scmp.le.s32.totalorder 1, %s7
    %p68 = scmp.lt.s32.totalorder %s7, 3
    %p69 = pnand %p67, %p68
    %p70 = pneg %p69
    // Predicated region
    $region9: #{_decode_jit.1} parent=5 // pred_check
      _
    $region10: #{_decode_jit.1} parent=5 // pred_check_branch
      %72 = sbr.rel (%p69) target = $region12
    $region11: #{_decode_jit.1} parent=5 // pred_region
      %s73 = ssub.s32 %s7, 1
    $region12: #{_decode_jit.1} parent=5 // pred_fallthru
      _
    %p74 = scmp.lt.s32.totalorder %s7, 2
    // Predicated region
    $region13: #{_decode_jit.1} parent=5 // pred_check
      %p75 = pneg %p74
    $region14: #{_decode_jit.1} parent=5 // pred_check_branch
      %77 = sbr.rel (%p75) target = $region16
    $region15: #{_decode_jit.1} parent=5 // pred_region
      // Predicated region
      $region17: #{_decode_jit.1} parent=15 // pred_check
        %p78 = pneg %p27
      $region18: #{_decode_jit.1} parent=15 // pred_check_branch
        %80 = sbr.rel (%p78) target = $region20
      $region19: #{_decode_jit.1} parent=15 // pred_region
        %p81 = scmp.lt.s32.totalorder %s7, 1
        %s82 = scalar_select %p81, %s7, 1
        %s83 = smul.addr %s82, 8
        %s84 = scalar_lea.vmem %s0, %s83
      $region20: #{_decode_jit.1} parent=15 // pred_fallthru
        _
    $region16: #{_decode_jit.1} parent=5 // pred_fallthru
      _
    %p85 = scmp.le.s32.totalorder 1, %s7
    %p86 = scmp.lt.s32.totalorder %s7, 3
    %p87 = pnand %p85, %p86
    %p88 = pneg %p87
    // Predicated region
    $region21: #{_decode_jit.1} parent=5 // pred_check
      _
    $region22: #{_decode_jit.1} parent=5 // pred_check_branch
      %90 = sbr.rel (%p87) target = $region24
    $region23: #{_decode_jit.1} parent=5 // pred_region
      %s91 = ssub.s32 %s7, 1
      %p92 = scmp.lt.s32.totalorder %s12, 1
      %s93 = scalar_select %p92, %s12, 1
      %s94 = smul.addr %s93, 8
      %s95 = scalar_lea.vmem %s0, %s94
      %p96 = pneg %p33
      %p97 = pneg %p30
      %p98 = pneg %p59
      %p99 = pneg %p56
      %p100 = scmp.lt.s32.totalorder %s12, 1
      %s101 = scalar_select %p100, %s12, 1
      %s102 = smul.addr %s101, 8
      %s103 = scalar_lea.vmem %s1, %s102
      %p104 = scmp.lt.s32.totalorder %s12, 1
      %s105 = scalar_select %p104, %s12, 1
      %s106 = smul.addr %s105, 8
      %s107 = scalar_lea.vmem %s0, %s106
      %p108 = scmp.lt.s32.totalorder %s12, 1
      %s109 = scalar_select %p108, %s12, 1
      %s110 = smul.addr %s109, 8
      %s111 = scalar_lea.vmem %s1, %s110
      %v112 = vlaneseq
      %v113 = vand.u32 %v112, 127
      %s114 = smul.u32 %s12, 128
      %v115 = vstv %s114
      %v116 = vadd.s32 %v115, %v113
      %v117 = vcvt.s32.f32 %v116
      %v118 = vadd.f32 %v117, 0.5
      %v119 = vmul.f32 %v118, 0.0625
      %v120 = vfloor.f32 %v119
      %v121 = vmul.f32 %v120, 16.0
      %v122 = vsub.f32 %v117, %v121
      %v123 = vadd.f32 %v122, 0.5
      %v124 = vmul.f32 %v123, 8.0
      %v125 = vadd.f32 %v120, 0.5
      %v126 = vmul.f32 %v125, 8.0
      %v127 = vld [vmem:[%s107] sm:$0x1]
      %v128 = vld [vmem:[%s107 + $0x1] sm:$0x1]
      %v129 = vld [vmem:[%s107 + $0x2] sm:$0x1]
      %v130 = vld [vmem:[%s107 + $0x3] sm:$0x1]
      %v131 = vmul.f32 %v127, 32.0
      %v132 = vadd.f32 %v131, %v124
      %v133 = vmul.f32 %v128, 32.0
      %v134 = vadd.f32 %v133, %v126
      %v135 = vmul.f32 %v129, 1.442695
      %v136 = vpow.pop %v135
      %v137 = vmul.f32 %v136, 32.0
      %v138 = vmul.f32 %v130, 1.442695
      %v139 = vpow.pop %v138
      %v140 = vmul.f32 %v139, 32.0
      %v141 = vld [vmem:[%s107 + $0x4] sm:$0x1]
      %v142 = vld [vmem:[%s107 + $0x5] sm:$0x1]
      %vm143 = vcmp.gt.f32.partialorder %v142, %v141
      %v144 = vsel %vm143, %v142, %v141
      %v145 = vsel %vm143, 1.0, 0.0
      %v146 = vld [vmem:[%s107 + $0x6] sm:$0x1]
      %vm147 = vcmp.gt.f32.partialorder %v146, %v144
      %v148 = vsel %vm147, %v146, %v144
      %v149 = vsel %vm147, 2.0, %v145
      %v150 = vxor.u32 %v148, 2147483648
      %v151 = vmul.f32 %v150, 1.442695
      %v152 = vpow.pop %v151
      %v153 = vadd.f32 %v152, 1.0
      %v154 = vrcp.pop %v153
      %v155 = vmul.f32 %v153, %v154
      %v156 = vsub.f32 1.0, %v155
      %v157 = vmul.f32 %v154, %v156
      %v158 = vadd.f32 %v154, %v157
      %vm159 = vweird.f32 %v153
      %vm160 = vweird.f32 %v154
      %vm161 = vmor %vm159, %vm160
      %v162 = vsel %vm161, %v154, %v158
      %v163 = vand.u32 2147483647, %v153
      %vm164 = vcmp.eq.f32.partialorder %v163, 8.507059e+37
      %v165 = vand.u32 %v153, 2147483648
      %v166 = vor.u32 1.1754944e-38, %v165
      %v167 = vsel %vm164, %v166, %v162
      %v168 = vmul.f32 1.0, %v167
      %v169 = vmul.f32 %v137, 0.5
      %v170 = vsub.f32 %v132, %v169
      %171 = vst [vmem:[%s111] sm:$0x1] %v170
      %v172 = vmul.f32 %v140, 0.5
      %v173 = vsub.f32 %v134, %v172
      %174 = vst [vmem:[%s111 + $0x1] sm:$0x1] %v173
      %v175 = vadd.f32 %v132, %v169
      %176 = vst [vmem:[%s111 + $0x2] sm:$0x1] %v175
      %v177 = vadd.f32 %v134, %v172
      %178 = vst [vmem:[%s111 + $0x3] sm:$0x1] %v177
      %179 = vst [vmem:[%s111 + $0x4] sm:$0x1] %v168
      %180 = vst [vmem:[%s111 + $0x5] sm:$0x1] %v149
      %p181 = scmp.lt.s32.totalorder %s12, 1
      %s182 = scalar_select %p181, %s12, 1
      %s183 = smul.addr %s182, 8
      %s184 = scalar_lea.vmem %s1, %s183
      // Predicated region
      $region25: #{_decode_jit.1} parent=23 // pred_check
        %p185 = pneg %p56
      $region26: #{_decode_jit.1} parent=23 // pred_check_branch
        %187 = sbr.rel (%p185) target = $region28
      $region27: #{_decode_jit.1} parent=23 // pred_region
        _
      $region28: #{_decode_jit.1} parent=23 // pred_fallthru
        _
    $region24: #{_decode_jit.1} parent=5 // pred_fallthru
      _
    %p188 = scmp.le.s32.totalorder 2, %s7
    // Predicated region
    $region29: #{_decode_jit.1} parent=5 // pred_check
      %p189 = pneg %p188
    $region30: #{_decode_jit.1} parent=5 // pred_check_branch
      %191 = sbr.rel (%p189) target = $region32
    $region31: #{_decode_jit.1} parent=5 // pred_region
      %s192 = ssub.s32 %s7, 2
      // Predicated region
      $region33: #{_decode_jit.1} parent=31 // pred_check
        %p193 = pneg %p62
      $region34: #{_decode_jit.1} parent=31 // pred_check_branch
        %195 = sbr.rel (%p193) target = $region36
      $region35: #{_decode_jit.1} parent=31 // pred_region
        %p196 = scmp.lt.s32.totalorder %s13, 1
        %s197 = scalar_select %p196, %s13, 1
        %s198 = smul.addr %s197, 8
        %s199 = scalar_lea.vmem %s1, %s198
      $region36: #{_decode_jit.1} parent=31 // pred_fallthru
        _
    $region32: #{_decode_jit.1} parent=5 // pred_fallthru
      _
  $region6: #{_decode_jit.1} parent=0 // loop_footer
    %s11 = sadd.s32 1, %s7
  $region7: #{_decode_jit.1} parent=0 // loop_footer_branch
    %6 = sbr.rel target = $region3
  $region8: #{_decode_jit.1} parent=0 // loop_exit
    _

</llo_original>
